<compile_context>
chip_gen: v7x
topology: tpu7x:2x2x1
jax: 0.10.0
libtpu: 0.0.40
codegen_flags: <defaults>
</compile_context>

<pallas_src>
import jax
import jax.numpy as jnp
from jax.experimental import pallas as pl
from jax.experimental.pallas import tpu as pltpu


def _dbl_kernel(losses_ref, logsig_ref, out_ref):
    # losses_ref, logsig_ref: (1, loss_n) f32 in VMEM (full-array blocks).
    # out_ref: (1, 1) f32 in SMEM (scalar result via the scalar path).
    losses = losses_ref[...]                       # (1, N)
    clamped = jnp.clip(logsig_ref[...], 0.0, 10.0)  # (1, N)

    # loss / (2*sigma^2) == loss * 0.5 * exp(-2*log_sigma)   (EUP exp, no divide)
    weighted = losses * (0.5 * jnp.exp(-2.0 * clamped))

    # Fused single reduction: sum(weighted) + sum(clamped).
    out_ref[0, 0] = jnp.sum(weighted + clamped)


def dynamic_balanced_loss(losses, log_sigmas):
    """losses: (loss_n,) f32 array of scalar loss values.
    log_sigmas: (loss_n,) f32 parameter vector.
    Returns scalar f32 total loss (forward value of DynamicBalancedLoss)."""
    loss_n = losses.shape[0]
    if log_sigmas.shape[0] != loss_n:
        raise ValueError(
            f"Expected {log_sigmas.shape[0]} losses, got {loss_n}")
    if loss_n == 0:
        # Degenerate case: no losses, no regularizer.
        return jnp.float32(0.0)

    losses_2d = losses.astype(jnp.float32).reshape(1, loss_n)
    logsig_2d = log_sigmas.astype(jnp.float32).reshape(1, loss_n)

    out = pl.pallas_call(
        _dbl_kernel,
        out_shape=jax.ShapeDtypeStruct((1, 1), jnp.float32),
        in_specs=[
            pl.BlockSpec(memory_space=pltpu.VMEM),   # losses, full array
            pl.BlockSpec(memory_space=pltpu.VMEM),   # log_sigmas, full array
        ],
        out_specs=pl.BlockSpec(memory_space=pltpu.SMEM),
        cost_estimate=pl.CostEstimate(
            flops=6 * loss_n,
            transcendentals=loss_n,
            bytes_accessed=8 * loss_n + 4,
        ),
    )(losses_2d, logsig_2d)
    return out[0, 0]


def _reference(losses, log_sigmas):
    clamped = jnp.clip(log_sigmas, 0.0, 10.0)
    sigmas = jnp.exp(clamped)
    weighted = losses / (2.0 * sigmas ** 2)
    return jnp.sum(weighted) + jnp.sum(clamped)


if __name__ == "__main__":
    loss_n = 3

    key = jax.random.PRNGKey(0)
    k_loss, k_sig = jax.random.split(key)

    # Deterministic example scalar losses and parameter values
    # (log_sigmas includes negative values to exercise the clamp path).
    losses = jax.random.uniform(k_loss, (loss_n,), dtype=jnp.float32) * 2.0
    log_sigmas = jax.random.uniform(
        k_sig, (loss_n,), dtype=jnp.float32, minval=-1.0, maxval=2.0)

    total = dynamic_balanced_loss(losses, log_sigmas)
    total = jax.block_until_ready(total)

    ref = _reference(losses, log_sigmas)
    assert jnp.allclose(total, ref, rtol=1e-5, atol=1e-5), (total, ref)

    print("KERNEL_OK")
</pallas_src>

<mosaic_0001>
module attributes {stable_mosaic.version = 11 : i64} {
  func.func @_dbl_kernel(%arg0: memref<1x3xf32, #tpu.memory_space<vmem>>, %arg1: memref<1x3xf32, #tpu.memory_space<vmem>>, %arg2: memref<1x1xf32, #tpu.memory_space<smem>>) attributes {dimension_semantics = [], scalar_prefetch = 0 : i64, scratch_operands = 0 : i64, tpu.core_type = #tpu.core_type<tc>} {
    %c0 = arith.constant 0 : index
    %c0_0 = arith.constant 0 : index
    %0 = vector.load %arg0[%c0, %c0_0] : memref<1x3xf32, #tpu.memory_space<vmem>>, vector<1x3xf32>
    %c0_1 = arith.constant 0 : index
    %c0_2 = arith.constant 0 : index
    %1 = vector.load %arg1[%c0_1, %c0_2] : memref<1x3xf32, #tpu.memory_space<vmem>>, vector<1x3xf32>
    %cst = arith.constant 0.000000e+00 : f32
    %cst_3 = arith.constant 1.000000e+01 : f32
    %2 = vector.broadcast %cst : f32 to vector<1x3xf32>
    %3 = arith.maximumf %2, %1 : vector<1x3xf32>
    %4 = vector.broadcast %cst_3 : f32 to vector<1x3xf32>
    %5 = arith.minimumf %4, %3 : vector<1x3xf32>
    %cst_4 = arith.constant -2.000000e+00 : f32
    %6 = vector.broadcast %cst_4 : f32 to vector<1x3xf32>
    %7 = arith.mulf %6, %5 : vector<1x3xf32>
    %8 = math.exp %7 : vector<1x3xf32>
    %cst_5 = arith.constant 5.000000e-01 : f32
    %9 = vector.broadcast %cst_5 : f32 to vector<1x3xf32>
    %10 = arith.mulf %9, %8 : vector<1x3xf32>
    %11 = arith.mulf %0, %10 : vector<1x3xf32>
    %12 = arith.addf %11, %5 : vector<1x3xf32>
    %13 = vector.shape_cast %12 : vector<1x3xf32> to vector<1x1x3xf32>
    %cst_6 = arith.constant dense<0.000000e+00> : vector<1xf32>
    %14 = vector.multi_reduction <add>, %13, %cst_6 [1, 2] : vector<1x1x3xf32> to vector<1xf32>
    %15 = vector.shape_cast %14 : vector<1xf32> to vector<1x1x1xf32>
    %16 = vector.extract %15[0, 0, 0] : f32 from vector<1x1x1xf32>
    %c0_7 = arith.constant 0 : index
    %c0_8 = arith.constant 0 : index
    %17 = memref.load %arg2[%c0_7, %c0_8] : memref<1x1xf32, #tpu.memory_space<smem>>
    memref.store %16, %arg2[%c0_7, %c0_8] : memref<1x1xf32, #tpu.memory_space<smem>>
    return
  }
}

</mosaic_0001>

<llo_original>
// kernel: tpu_custom_call.1
$region0: #{tpu_custom_call.1}
  #allocation0 [shape = 'u32[]', space=smem, size = 0x4, offset = 0x4, fixed_abs, tag = 'smem constant byte address 0x4 - core index']
  #allocation1 [shape = 'u32[144,128]{1,0:T(1,128)}', space=vmem, size = 0x12000, scoped, tag = 'internal scratch']
  %s0 = inlined_call_operand.hbm [shape: f32[1,3], index: 0, kind: input, shape index: {}]
  %s1 = inlined_call_operand.vmem [shape: f32[1,3], index: 1, kind: input, shape index: {}]
  %s2 = inlined_call_operand.hbm [shape: f32[1,1], index: 2, kind: output, shape index: {}]
  %s3 = sld [smem:[#allocation0]]
  $region22: #{tpu_custom_call.1} parent=0
    _
  %s5 = ssub.s32 1, %s3
  %s6 = scalar_select 0, %s5, %s3
  $region1: #{tpu_custom_call.1} parent=0
    #allocation2 [shape = 'u8[512]{0}', space=vmem, size = 0x400, scoped, tag = 'input window, operand 0, single buffered']
    #allocation3 [shape = 's32[1]{0}', space=sflag, size = 0x4, scoped, tag = 'scoped memory for tpu_custom_call.1']
    #allocation4 [shape = 's32[1]{0}', space=sflag, size = 0x4, scoped, tag = 'scoped memory for tpu_custom_call.1']
    #allocation5 [shape = 'u8[512]{0}', space=smem, size = 0x200, scoped, tag = 'output window, operand 0, single buffered']
    %7 = vsyncpa [#allocation3], 0
    %8 = vsyncpa [#allocation4], 0
    // Predicated region
    $region2: #{tpu_custom_call.1} parent=1 // pred_check
      _
    $region3: #{tpu_custom_call.1} parent=1 // pred_check_branch
      %10 = sbr.rel (0) target = $region5
    $region4: #{tpu_custom_call.1} parent=1 // pred_region
      %s12 = ssub.s32 16, 16
      %13 = vsyncadd [#allocation3], %s12
      %s15 = sshll.u32 [#allocation2], 4
      %s16 = int_to_ptr.vmem [resolvable:$true] %s15
      %18 = dma.hbm_to_vmem [thread:$0]  %s0, 16, %s16, [#allocation3]
    $region5: #{tpu_custom_call.1} parent=1 // pred_fallthru
      _
    // Predicated region
    $region6: #{tpu_custom_call.1} parent=1 // pred_check
      _
    $region7: #{tpu_custom_call.1} parent=1 // pred_check_branch
      %20 = sbr.rel (0) target = $region9
    $region8: #{tpu_custom_call.1} parent=1 // pred_region
      _
    $region9: #{tpu_custom_call.1} parent=1 // pred_fallthru
      _
    // Predicated region
    $region10: #{tpu_custom_call.1} parent=1 // pred_check
      _
    $region11: #{tpu_custom_call.1} parent=1 // pred_check_branch
      %22 = sbr.rel (0) target = $region13
    $region12: #{tpu_custom_call.1} parent=1 // pred_region
      %23 = dma.done [#allocation3], 16
    $region13: #{tpu_custom_call.1} parent=1 // pred_fallthru
      _
    %v24 = vld [vmem:[#allocation2] sm:$0x1]
    %v25 = vld [vmem:[%s1] sm:$0x1]
    %v26 = vmax.f32 %v25, 0.0
    %v27 = vmin.f32 %v26, 10.0
    %v28 = vmul.f32 %v27, -2.0
    %v29 = vmul.f32 %v28, 1.442695
    %v30 = vpow.pop %v29
    %v31 = vmul.f32 %v30, 0.5
    %v32 = vmul.f32 %v24, %v31
    %v33 = vadd.f32 %v32, %v27
    %vm34 = vcmask 16384
    %v35 = vsel %vm34, %v33, 0.0
    %36 = vadd.xlane.f32.xlu0 %v35
    %v37 = vpop.xlane.xlu0 %36
    %v38 = vrot.slane %v37, 4
    %v39 = vadd.f32 %v37, %v38
    %v40 = vrot.slane %v39, 2
    %v41 = vadd.f32 %v39, %v40
    %v42 = vrot.slane %v41, 1
    %v43 = vadd.f32 %v41, %v42
    %s44 = vtos %v43
    %s45 = scalar_lea.smem [#allocation5], 0
    %46 = sst [smem:[%s45]] %s44
    // Predicated region
    $region14: #{tpu_custom_call.1} parent=1 // pred_check
      _
    $region15: #{tpu_custom_call.1} parent=1 // pred_check_branch
      %48 = sbr.rel (0) target = $region17
    $region16: #{tpu_custom_call.1} parent=1 // pred_region
      %s50 = ssub.s32 16, 16
      %51 = vsyncadd [#allocation4], %s50
      %54 = dma.smem_to_hbm [#allocation5], 16, %s2, [#allocation4]
    $region17: #{tpu_custom_call.1} parent=1 // pred_fallthru
      _
    // Predicated region
    $region18: #{tpu_custom_call.1} parent=1 // pred_check
      _
    $region19: #{tpu_custom_call.1} parent=1 // pred_check_branch
      %56 = sbr.rel (0) target = $region21
    $region20: #{tpu_custom_call.1} parent=1 // pred_region
      %57 = dma.done [#allocation4], 16
    $region21: #{tpu_custom_call.1} parent=1 // pred_fallthru
      _
    %58 = sfence
    %59 = vsyncpa [#allocation3], 1
    %60 = vsyncpa [#allocation4], 1

</llo_original>
